<compile_context>
chip_gen: v6e
topology: v6e:2x2x1
jax: 0.10.0
libtpu: 0.0.40
codegen_flags: <defaults>
</compile_context>

<pallas_src>
import jax
import jax.numpy as jnp
import numpy as np
from jax.experimental import pallas as pl
from jax.experimental.pallas import tpu as pltpu

EPS = 1e-5
_TILE_BUDGET_BYTES = 3 * 1024 * 1024       # per-buffer row-tile budget
_VMEM_LIMIT_BYTES = 32 * 1024 * 1024       # safe on v5e/v6e (128 MiB) and v7x (64 MiB)


# ----------------------------- Pallas kernels ------------------------------ #

def _dsbn_stats_kernel(x_ref, sum_ref, ssq_ref):
    # x_ref:   (TN, C, HW)  one row-tile of one domain (C on sublanes, HW on lanes)
    # sum_ref: (C, 1) f32   resident accumulator (same block across the tile axis)
    # ssq_ref: (C, 1) f32
    @pl.when(pl.program_id(1) == 0)
    def _init():
        sum_ref[...] = jnp.zeros_like(sum_ref)
        ssq_ref[...] = jnp.zeros_like(ssq_ref)

    x = x_ref[...].astype(jnp.float32)
    # Reduce over rows (axis 0) and spatial lanes (axis 2); keep C on sublanes.
    sum_ref[...] += jnp.sum(x, axis=(0, 2), keepdims=True)[0]
    ssq_ref[...] += jnp.sum(x * x, axis=(0, 2), keepdims=True)[0]


def _dsbn_norm_kernel(x_ref, scale_ref, shift_ref, o_ref):
    # x_ref: (TN, C, HW); scale/shift: (C, 1) f32 folded per-channel affine.
    x = x_ref[...].astype(jnp.float32)
    y = x * scale_ref[...] + shift_ref[...]      # single mul + add per element
    o_ref[...] = y.astype(o_ref.dtype)


# ------------------------------- helpers ------------------------------------ #

def _pick_row_tile(n_rows, c, hw, itemsize):
    """Largest divisor of n_rows whose (TN, C, HW) tile fits the VMEM budget."""
    per_row = max(1, c * hw * itemsize)
    max_rows = max(1, _TILE_BUDGET_BYTES // per_row)
    tile = 1
    for cand in range(1, n_rows + 1):
        if n_rows % cand == 0 and cand <= max_rows:
            tile = cand
    return tile


def _apply_scale_shift(x4, scale3, shift3):
    """x4: (G, N, C, HW); scale3/shift3: (G, C, 1) f32. Returns (G, N, C, HW)."""
    G, N, C, HW = x4.shape
    tn = _pick_row_tile(N, C, HW, jnp.dtype(x4.dtype).itemsize)
    n_tiles = N // tn

    return pl.pallas_call(
        _dsbn_norm_kernel,
        out_shape=jax.ShapeDtypeStruct((G, N, C, HW), x4.dtype),
        grid_spec=pltpu.PrefetchScalarGridSpec(
            num_scalar_prefetch=0,
            grid=(G, n_tiles),
            in_specs=[
                pl.BlockSpec((pl.Squeezed(), tn, C, HW), lambda g, t: (g, t, 0, 0)),
                pl.BlockSpec((pl.Squeezed(), C, 1), lambda g, t: (g, 0, 0)),
                pl.BlockSpec((pl.Squeezed(), C, 1), lambda g, t: (g, 0, 0)),
            ],
            out_specs=pl.BlockSpec((pl.Squeezed(), tn, C, HW),
                                   lambda g, t: (g, t, 0, 0)),
        ),
        compiler_params=pltpu.CompilerParams(
            dimension_semantics=("parallel", "parallel"),
            vmem_limit_bytes=_VMEM_LIMIT_BYTES),
    )(x4, scale3, shift3)


# ------------------------------- wrappers ----------------------------------- #

def dsbn_forward_train(x_nchw, weight, bias, num_domains, eps=EPS):
    """x_nchw: (B, C, H, W); weight/bias: (num_domains, C). Returns NCHW."""
    B, C, H, W = x_nchw.shape
    assert B % num_domains == 0, "the batch size should be times of BN groups"
    nd = B // num_domains
    HW = H * W

    # Free reshape (no data movement): NCHW -> (D, nd, C, H*W).
    x4 = x_nchw.reshape(num_domains, nd, C, HW)

    # ---- pass 1: per-domain per-channel sum / sum-of-squares (tiled rows) ----
    tn = _pick_row_tile(nd, C, HW, jnp.dtype(x4.dtype).itemsize)
    n_tiles = nd // tn

    sums, ssqs = pl.pallas_call(
        _dsbn_stats_kernel,
        out_shape=(jax.ShapeDtypeStruct((num_domains, C, 1), jnp.float32),
                   jax.ShapeDtypeStruct((num_domains, C, 1), jnp.float32)),
        grid_spec=pltpu.PrefetchScalarGridSpec(
            num_scalar_prefetch=0,
            grid=(num_domains, n_tiles),
            in_specs=[
                pl.BlockSpec((pl.Squeezed(), tn, C, HW), lambda d, t: (d, t, 0, 0)),
            ],
            out_specs=(
                pl.BlockSpec((pl.Squeezed(), C, 1), lambda d, t: (d, 0, 0)),
                pl.BlockSpec((pl.Squeezed(), C, 1), lambda d, t: (d, 0, 0)),
            ),
        ),
        compiler_params=pltpu.CompilerParams(
            dimension_semantics=("parallel", "arbitrary"),
            vmem_limit_bytes=_VMEM_LIMIT_BYTES),
    )(x4)

    # ---- fold stats + affine into per-channel scale/shift (tiny, plain JAX) ----
    count = float(nd * HW)
    mean3 = sums / count                                        # (D, C, 1)
    var3 = jnp.maximum(ssqs / count - mean3 * mean3, 0.0)       # biased variance
    inv3 = jax.lax.rsqrt(var3 + eps)
    w3 = weight.astype(jnp.float32)[:, :, None]
    b3 = bias.astype(jnp.float32)[:, :, None]
    scale3 = w3 * inv3
    shift3 = b3 - mean3 * scale3

    # ---- pass 2: tiled normalize (one mul + one add per element) ----
    out4 = _apply_scale_shift(x4, scale3, shift3)
    return out4.reshape(B, C, H, W)


def dsbn_forward_eval(x_nchw, weight, bias, running_mean, running_var,
                      target_bn_idx=-1, eps=EPS):
    """Eval path: single BN at target_bn_idx using running statistics."""
    B, C, H, W = x_nchw.shape
    HW = H * W
    x4 = x_nchw.reshape(1, B, C, HW)                            # free reshape

    w = weight[target_bn_idx].astype(jnp.float32)
    b = bias[target_bn_idx].astype(jnp.float32)
    m = running_mean[target_bn_idx].astype(jnp.float32)
    v = running_var[target_bn_idx].astype(jnp.float32)
    inv = jax.lax.rsqrt(v + eps)
    scale3 = (w * inv)[None, :, None]                           # (1, C, 1)
    shift3 = (b - m * w * inv)[None, :, None]

    out4 = _apply_scale_shift(x4, scale3, shift3)
    return out4.reshape(B, C, H, W)


# ------------------------------ references ---------------------------------- #

def _ref_train(x, weight, bias, num_domains):
    B, C, H, W = x.shape
    nd = B // num_domains
    outs = []
    for d in range(num_domains):
        sub = x[d * nd:(d + 1) * nd]
        mean = jnp.mean(sub, axis=(0, 2, 3), keepdims=True)
        var = jnp.mean((sub - mean) ** 2, axis=(0, 2, 3), keepdims=True)
        y = (sub - mean) / jnp.sqrt(var + EPS)
        y = y * weight[d].reshape(1, C, 1, 1) + bias[d].reshape(1, C, 1, 1)
        outs.append(y)
    return jnp.concatenate(outs, axis=0)


def _ref_eval(x, weight, bias, running_mean, running_var, idx):
    C = x.shape[1]
    w = weight[idx].reshape(1, C, 1, 1)
    b = bias[idx].reshape(1, C, 1, 1)
    m = running_mean[idx].reshape(1, C, 1, 1)
    v = running_var[idx].reshape(1, C, 1, 1)
    return (x - m) / jnp.sqrt(v + EPS) * w + b


# --------------------------------- main -------------------------------------- #

if __name__ == "__main__":
    key = jax.random.PRNGKey(0)
    B, C, H, W = 4, 8, 16, 16          # H*W = 256 -> lane-dense last dim
    num_domains = 2
    target_bn_idx = -1

    kx, kw, kb, km, kv = jax.random.split(key, 5)
    x = jax.random.normal(kx, (B, C, H, W), dtype=jnp.float32)

    # Synthetic params (PyTorch default would be weight=1, bias=0; perturb so
    # the per-domain BNs actually differ).
    weight = jax.random.uniform(kw, (num_domains, C), jnp.float32, 0.5, 1.5)
    bias = 0.1 * jax.random.normal(kb, (num_domains, C), dtype=jnp.float32)
    running_mean = 0.1 * jax.random.normal(km, (num_domains, C), dtype=jnp.float32)
    running_var = jax.random.uniform(kv, (num_domains, C), jnp.float32, 0.5, 1.5)

    out_train = jax.block_until_ready(
        dsbn_forward_train(x, weight, bias, num_domains))
    out_eval = jax.block_until_ready(
        dsbn_forward_eval(x, weight, bias, running_mean, running_var,
                          target_bn_idx))

    ref_tr = _ref_train(x, weight, bias, num_domains)
    ref_ev = _ref_eval(x, weight, bias, running_mean, running_var, target_bn_idx)

    np.testing.assert_allclose(np.asarray(out_train), np.asarray(ref_tr),
                               rtol=1e-4, atol=1e-5)
    np.testing.assert_allclose(np.asarray(out_eval), np.asarray(ref_ev),
                               rtol=1e-4, atol=1e-5)

    print("KERNEL_OK")
</pallas_src>

<mosaic_0001>
module attributes {stable_mosaic.version = 11 : i64} {
  func.func @_dsbn_stats_kernel(%arg0: i32, %arg1: i32, %arg2: memref<1x2x8x256xf32, #tpu.memory_space<vmem>>, %arg3: memref<1x8x1xf32, #tpu.memory_space<vmem>>, %arg4: memref<1x8x1xf32, #tpu.memory_space<vmem>>) attributes {dimension_semantics = [#tpu.dimension_semantics<parallel>, #tpu.dimension_semantics<arbitrary>], iteration_bounds = array<i64: 2, 1>, scalar_prefetch = 0 : i64, scratch_operands = 0 : i64, tpu.core_type = #tpu.core_type<tc>, window_params = [{transform_indices = @transform_0, window_bounds = array<i64: 1, 2, 8, 256>}, {transform_indices = @transform_1, window_bounds = array<i64: 1, 8, 1>}, {transform_indices = @transform_2, window_bounds = array<i64: 1, 8, 1>}]} {
    %c0_i32 = arith.constant 0 : i32
    %0 = arith.cmpi eq, %arg1, %c0_i32 : i32
    %1 = arith.extui %0 : i1 to i32
    %c0_i32_0 = arith.constant 0 : i32
    %2 = arith.cmpi ne, %1, %c0_i32_0 : i32
    scf.if %2 {
      %cst_17 = arith.constant 0.000000e+00 : f32
      %24 = vector.broadcast %cst_17 : f32 to vector<8x1xf32>
      %c0_18 = arith.constant 0 : index
      %c0_19 = arith.constant 0 : index
      %c0_20 = arith.constant 0 : index
      %25 = vector.load %arg3[%c0_18, %c0_19, %c0_20] : memref<1x8x1xf32, #tpu.memory_space<vmem>>, vector<1x8x1xf32>
      %26 = vector.shape_cast %25 : vector<1x8x1xf32> to vector<8x1xf32>
      %27 = vector.shape_cast %24 : vector<8x1xf32> to vector<1x8x1xf32>
      tpu.vector_store %arg3[%c0_18, %c0_19, %c0_20], %27 {strides = array<i32>} : memref<1x8x1xf32, #tpu.memory_space<vmem>>, vector<1x8x1xf32>,
      %cst_21 = arith.constant 0.000000e+00 : f32
      %28 = vector.broadcast %cst_21 : f32 to vector<8x1xf32>
      %c0_22 = arith.constant 0 : index
      %c0_23 = arith.constant 0 : index
      %c0_24 = arith.constant 0 : index
      %29 = vector.load %arg4[%c0_22, %c0_23, %c0_24] : memref<1x8x1xf32, #tpu.memory_space<vmem>>, vector<1x8x1xf32>
      %30 = vector.shape_cast %29 : vector<1x8x1xf32> to vector<8x1xf32>
      %31 = vector.shape_cast %28 : vector<8x1xf32> to vector<1x8x1xf32>
      tpu.vector_store %arg4[%c0_22, %c0_23, %c0_24], %31 {strides = array<i32>} : memref<1x8x1xf32, #tpu.memory_space<vmem>>, vector<1x8x1xf32>,
    } else {
    }
    %c0 = arith.constant 0 : index
    %c0_1 = arith.constant 0 : index
    %c0_2 = arith.constant 0 : index
    %c0_3 = arith.constant 0 : index
    %3 = vector.load %arg2[%c0, %c0_1, %c0_2, %c0_3] : memref<1x2x8x256xf32, #tpu.memory_space<vmem>>, vector<1x2x8x256xf32>
    %4 = vector.shape_cast %3 : vector<1x2x8x256xf32> to vector<2x8x256xf32>
    %c0_4 = arith.constant 0 : index
    %c0_5 = arith.constant 0 : index
    %c0_6 = arith.constant 0 : index
    %5 = vector.load %arg3[%c0_4, %c0_5, %c0_6] : memref<1x8x1xf32, #tpu.memory_space<vmem>>, vector<1x8x1xf32>
    %6 = vector.shape_cast %5 : vector<1x8x1xf32> to vector<8x1xf32>
    %cst = arith.constant dense<0.000000e+00> : vector<8xf32>
    %7 = vector.multi_reduction <add>, %4, %cst [0, 2] : vector<2x8x256xf32> to vector<8xf32>
    %8 = vector.shape_cast %7 : vector<8xf32> to vector<1x8x1xf32>
    %9 = vector.shape_cast %8 : vector<1x8x1xf32> to vector<8x1xf32>
    %10 = arith.addf %6, %9 : vector<8x1xf32>
    %c0_7 = arith.constant 0 : index
    %c0_8 = arith.constant 0 : index
    %c0_9 = arith.constant 0 : index
    %11 = vector.load %arg3[%c0_7, %c0_8, %c0_9] : memref<1x8x1xf32, #tpu.memory_space<vmem>>, vector<1x8x1xf32>
    %12 = vector.shape_cast %11 : vector<1x8x1xf32> to vector<8x1xf32>
    %13 = vector.shape_cast %10 : vector<8x1xf32> to vector<1x8x1xf32>
    tpu.vector_store %arg3[%c0_7, %c0_8, %c0_9], %13 {strides = array<i32>} : memref<1x8x1xf32, #tpu.memory_space<vmem>>, vector<1x8x1xf32>,
    %c0_10 = arith.constant 0 : index
    %c0_11 = arith.constant 0 : index
    %c0_12 = arith.constant 0 : index
    %14 = vector.load %arg4[%c0_10, %c0_11, %c0_12] : memref<1x8x1xf32, #tpu.memory_space<vmem>>, vector<1x8x1xf32>
    %15 = vector.shape_cast %14 : vector<1x8x1xf32> to vector<8x1xf32>
    %16 = arith.mulf %4, %4 : vector<2x8x256xf32>
    %cst_13 = arith.constant dense<0.000000e+00> : vector<8xf32>
    %17 = vector.multi_reduction <add>, %16, %cst_13 [0, 2] : vector<2x8x256xf32> to vector<8xf32>
    %18 = vector.shape_cast %17 : vector<8xf32> to vector<1x8x1xf32>
    %19 = vector.shape_cast %18 : vector<1x8x1xf32> to vector<8x1xf32>
    %20 = arith.addf %15, %19 : vector<8x1xf32>
    %c0_14 = arith.constant 0 : index
    %c0_15 = arith.constant 0 : index
    %c0_16 = arith.constant 0 : index
    %21 = vector.load %arg4[%c0_14, %c0_15, %c0_16] : memref<1x8x1xf32, #tpu.memory_space<vmem>>, vector<1x8x1xf32>
    %22 = vector.shape_cast %21 : vector<1x8x1xf32> to vector<8x1xf32>
    %23 = vector.shape_cast %20 : vector<8x1xf32> to vector<1x8x1xf32>
    tpu.vector_store %arg4[%c0_14, %c0_15, %c0_16], %23 {strides = array<i32>} : memref<1x8x1xf32, #tpu.memory_space<vmem>>, vector<1x8x1xf32>,
    return
  }
  func.func @transform_0(%arg0: i32, %arg1: i32) -> (i32, i32, i32, i32) {
    %c0_i32 = arith.constant 0 : i32
    %c0_i32_0 = arith.constant 0 : i32
    %c0_i32_1 = arith.constant 0 : i32
    return %arg0, %arg1, %c0_i32, %c0_i32_0 : i32, i32, i32, i32
  }
  func.func @transform_1(%arg0: i32, %arg1: i32) -> (i32, i32, i32) {
    %c0_i32 = arith.constant 0 : i32
    %c0_i32_0 = arith.constant 0 : i32
    %c0_i32_1 = arith.constant 0 : i32
    return %arg0, %c0_i32, %c0_i32_0 : i32, i32, i32
  }
  func.func @transform_2(%arg0: i32, %arg1: i32) -> (i32, i32, i32) {
    %c0_i32 = arith.constant 0 : i32
    %c0_i32_0 = arith.constant 0 : i32
    %c0_i32_1 = arith.constant 0 : i32
    return %arg0, %c0_i32, %c0_i32_0 : i32, i32, i32
  }
}

</mosaic_0001>

<llo_original>
// kernel: tpu_custom_call.1
$region0: #{tpu_custom_call.1}
  #allocation0 [shape = 'u32[]', space=smem, size = 0x4, offset = 0x4, fixed_abs, tag = 'smem constant byte address 0x4 - core index']
  #allocation1 [shape = 'u32[144,128]{1,0:T(1,128)}', space=vmem, size = 0x12000, scoped, tag = 'internal scratch']
  %s0 = inlined_call_operand.hbm [shape: f32[2,2,8,256], index: 0, kind: input, shape index: {}]
  %s1 = inlined_call_operand.vmem [shape: f32[2,8,1], index: 1, kind: output, shape index: {0}]
  %s2 = inlined_call_operand.vmem [shape: f32[2,8,1], index: 2, kind: output, shape index: {1}]
  %3 = xla_tuple %s1, %s2
  %s4 = sld [smem:[#allocation0]]
  $region53: #{tpu_custom_call.1} parent=0
    _
  %s6 = ssub.s32 1, %s4
  %s7 = scalar_select 0, %s6, %s4
  $region1: #{tpu_custom_call.1} parent=0
    #allocation2 [shape = 'u8[32768]{0}', space=vmem, size = 0x8000, scoped, tag = 'input window, operand 0']
    #allocation3 [shape = 's32[2]{0}', space=sflag, size = 0x8, scoped, tag = 'scoped memory for tpu_custom_call.1']
    %8 = vsyncpa [#allocation3], 0
    %s9 = scalar_lea.sflag [#allocation3], 1
    %10 = vsyncpa %s9, 0
    loop: start=0, step=1, limit=4
    $region2: #{tpu_custom_call.1} parent=1 // loop_pre_header
      _
    $region3: #{tpu_custom_call.1} parent=1 // loop_header
      %s12 = sphi 0, %s16
      %p13 = scmp.ge.s32.totalorder %s12, 4
      %s19 = sphi 0, %s31
      %s20 = sphi 0, %s27
      %s21 = sphi 0, %s19
      %s22 = sphi 0, %s20
      %s23 = sphi 0, %s21
      %s24 = sphi 0, %s22
      %s36 = sphi 0, %s38
      %s39 = sphi 0, %s36
      %s40 = sphi 0, %s39
      %s56 = sphi 0, %s40
      %s62 = sphi 0, %s64
      %s65 = sphi 0, %s62
      %s66 = sphi 0, %s65
      %s82 = sphi 0, %s66
      %s88 = sphi 0, %s90
      %s91 = sphi 0, %s88
      %s92 = sphi 0, %s91
      %s108 = sphi 0, %s92
    $region4: #{tpu_custom_call.1} parent=1 // loop_header_branch
      %15 = sbr.rel (%p13) target = $region8
    $region5: #{tpu_custom_call.1} parent=1 // loop_body
      %s17 = ssub.s32 %s12, 1
      %s18 = ssub.s32 %s12, 2
      %s25 = sadd.s32 1, %s20
      %p26 = scmp.ge.s32.totalorder %s25, 1
      %s27 = scalar_select %p26, 0, %s25
      %s28 = sadd.s32 1, %s19
      %s29 = scalar_select %p26, %s28, %s19
      %p30 = scmp.ge.s32.totalorder %s29, 2
      %s31 = scalar_select %p30, 0, %s29
      %s32 = ssub.s32 %s19, %s31
      %s33 = ssub.s32 %s20, %s27
      %s34 = sor.u32 %s32, %s33
      %p35 = scmp.eq.s32.totalorder %s34, 0
      %s37 = sadd.s32 %s36, 1
      %s38 = scalar_select %p35, %s36, %s37
      %p41 = pneg %p35
      %p42 = scmp.eq.s32.totalorder %s12, 1
      %p43 = por %p41, %p42
      %p44 = scmp.ne.s32.totalorder %s36, %s39
      %p45 = scmp.eq.s32.totalorder %s12, 0
      %p46 = por %p44, %p45
      %p47 = scmp.ne.s32.totalorder %s36, %s39
      %p48 = scmp.eq.s32.totalorder %s17, 1
      %p49 = por %p47, %p48
      %p50 = scmp.ne.s32.totalorder %s39, %s40
      %p51 = scmp.eq.s32.totalorder %s17, 0
      %p52 = por %p50, %p51
      %p53 = scmp.ne.s32.totalorder %s39, %s40
      %p54 = scmp.eq.s32.totalorder %s18, 1
      %p55 = por %p53, %p54
      %p57 = scmp.ne.s32.totalorder %s40, %s56
      %p58 = scmp.eq.s32.totalorder %s18, 0
      %p59 = por %p57, %p58
      %s60 = ssub.s32 %s19, %s31
      %p61 = scmp.eq.s32.totalorder %s60, 0
      %s63 = sadd.s32 %s62, 1
      %s64 = scalar_select %p61, %s62, %s63
      %p67 = pneg %p61
      %p68 = scmp.eq.s32.totalorder %s12, 1
      %p69 = por %p67, %p68
      %p70 = scmp.ne.s32.totalorder %s62, %s65
      %p71 = scmp.eq.s32.totalorder %s12, 0
      %p72 = por %p70, %p71
      %p73 = scmp.ne.s32.totalorder %s62, %s65
      %p74 = scmp.eq.s32.totalorder %s17, 1
      %p75 = por %p73, %p74
      %p76 = scmp.ne.s32.totalorder %s65, %s66
      %p77 = scmp.eq.s32.totalorder %s17, 0
      %p78 = por %p76, %p77
      %p79 = scmp.ne.s32.totalorder %s65, %s66
      %p80 = scmp.eq.s32.totalorder %s18, 1
      %p81 = por %p79, %p80
      %p83 = scmp.ne.s32.totalorder %s66, %s82
      %p84 = scmp.eq.s32.totalorder %s18, 0
      %p85 = por %p83, %p84
      %s86 = ssub.s32 %s19, %s31
      %p87 = scmp.eq.s32.totalorder %s86, 0
      %s89 = sadd.s32 %s88, 1
      %s90 = scalar_select %p87, %s88, %s89
      %p93 = pneg %p87
      %p94 = scmp.eq.s32.totalorder %s12, 1
      %p95 = por %p93, %p94
      %p96 = scmp.ne.s32.totalorder %s88, %s91
      %p97 = scmp.eq.s32.totalorder %s12, 0
      %p98 = por %p96, %p97
      %p99 = scmp.ne.s32.totalorder %s88, %s91
      %p100 = scmp.eq.s32.totalorder %s17, 1
      %p101 = por %p99, %p100
      %p102 = scmp.ne.s32.totalorder %s91, %s92
      %p103 = scmp.eq.s32.totalorder %s17, 0
      %p104 = por %p102, %p103
      %p105 = scmp.ne.s32.totalorder %s91, %s92
      %p106 = scmp.eq.s32.totalorder %s18, 1
      %p107 = por %p105, %p106
      %p109 = scmp.ne.s32.totalorder %s92, %s108
      %p110 = scmp.eq.s32.totalorder %s18, 0
      %p111 = por %p109, %p110
      %p112 = scmp.le.s32.totalorder 1, %s12
      %p113 = scmp.lt.s32.totalorder %s12, 3
      %p114 = pnand %p112, %p113
      %p115 = pneg %p114
      // Predicated region
      $region9: #{tpu_custom_call.1} parent=5 // pred_check
        _
      $region10: #{tpu_custom_call.1} parent=5 // pred_check_branch
        %117 = sbr.rel (%p114) target = $region12
      $region11: #{tpu_custom_call.1} parent=5 // pred_region
        %s118 = ssub.s32 %s12, 1
      $region12: #{tpu_custom_call.1} parent=5 // pred_fallthru
        _
      %p119 = scmp.lt.s32.totalorder %s12, 2
      // Predicated region
      $region13: #{tpu_custom_call.1} parent=5 // pred_check
        %p120 = pneg %p119
      $region14: #{tpu_custom_call.1} parent=5 // pred_check_branch
        %122 = sbr.rel (%p120) target = $region16
      $region15: #{tpu_custom_call.1} parent=5 // pred_region
        // Predicated region
        $region17: #{tpu_custom_call.1} parent=15 // pred_check
          %p123 = pneg %p46
        $region18: #{tpu_custom_call.1} parent=15 // pred_check_branch
          %125 = sbr.rel (%p123) target = $region20
        $region19: #{tpu_custom_call.1} parent=15 // pred_region
          %s126 = sand.u32 %s36, 1
          %s127 = scalar_lea.sflag [#allocation3], %s126
          %s128 = sand.u32 %s36, 1
          %s129 = smul.addr %s128, 32
          %s130 = scalar_lea.vmem [#allocation2], %s129
          %s131 = smul.u32 2, %s20
          %s133 = ssub.s32 512, 512
          %134 = vsyncadd %s127, %s133
          %s135 = smul.addr %s131, 2
          %s136 = smul.addr %s19, 4
          %s137 = sadd.s32 %s135, %s136
          %s138 = smul.addr %s137, 128
          %s139 = scalar_lea.hbm %s0, %s138
          %s140 = sshll.u32 %s130, 4
          %s141 = int_to_ptr.vmem [resolvable:$true] %s140
          %146 = dma.hbm_to_vmem [thread:$0]  %s139, 512, %s141, %s127, 256, 256, 16
        $region20: #{tpu_custom_call.1} parent=15 // pred_fallthru
          _
      $region16: #{tpu_custom_call.1} parent=5 // pred_fallthru
        _
      %p147 = scmp.le.s32.totalorder 1, %s12
      %p148 = scmp.lt.s32.totalorder %s12, 3
      %p149 = pnand %p147, %p148
      %p150 = pneg %p149
      // Predicated region
      $region21: #{tpu_custom_call.1} parent=5 // pred_check
        _
      $region22: #{tpu_custom_call.1} parent=5 // pred_check_branch
        %152 = sbr.rel (%p149) target = $region24
      $region23: #{tpu_custom_call.1} parent=5 // pred_region
        %s153 = ssub.s32 %s12, 1
        %s154 = sand.u32 %s39, 1
        %s155 = scalar_lea.sflag [#allocation3], %s154
        %s156 = sand.u32 %s39, 1
        %s157 = smul.addr %s156, 32
        %s158 = scalar_lea.vmem [#allocation2], %s157
        // Predicated region
        $region25: #{tpu_custom_call.1} parent=23 // pred_check
          %p159 = pneg %p52
        $region26: #{tpu_custom_call.1} parent=23 // pred_check_branch
          %161 = sbr.rel (%p159) target = $region28
        $region27: #{tpu_custom_call.1} parent=23 // pred_region
          %162 = dma.done %s155, 512
        $region28: #{tpu_custom_call.1} parent=23 // pred_fallthru
          _
        %s163 = sand.u32 %s39, 1
        %s164 = scalar_lea.sflag [#allocation3], %s163
        %s165 = sand.u32 %s39, 1
        %s166 = smul.addr %s165, 32
        %s167 = scalar_lea.vmem [#allocation2], %s166
        %p168 = pneg %p52
        %p169 = pneg %p49
        %p170 = pneg %p78
        %p171 = pneg %p75
        %p172 = scmp.lt.s32.totalorder %s21, 1
        %s173 = scalar_select %p172, %s21, 1
        %s174 = smul.addr %s173, 8
        %s175 = scalar_lea.vmem %s1, %s174
        %p176 = pneg %p104
        %p177 = pneg %p101
        %p178 = scmp.lt.s32.totalorder %s21, 1
        %s179 = scalar_select %p178, %s21, 1
        %s180 = smul.addr %s179, 8
        %s181 = scalar_lea.vmem %s2, %s180
        %s182 = smul.u32 2, %s22
        %p183 = scmp.lt.s32.totalorder %s21, 1
        %s184 = scalar_select %p183, %s21, 1
        %s185 = smul.addr %s184, 8
        %s186 = scalar_lea.vmem %s1, %s185
        %p187 = scmp.lt.s32.totalorder %s21, 1
        %s188 = scalar_select %p187, %s21, 1
        %s189 = smul.addr %s188, 8
        %s190 = scalar_lea.vmem %s2, %s189
        %p191 = scmp.eq.s32.totalorder %s22, 0
        // Predicated region
        $region29: #{tpu_custom_call.1} parent=23 // pred_check
          %p192 = pneg %p191
        $region30: #{tpu_custom_call.1} parent=23 // pred_check_branch
          %194 = sbr.rel (%p192) target = $region32
        $region31: #{tpu_custom_call.1} parent=23 // pred_region
          %vm195 = vcmask 7168
          %196 = vst.msk [vmem:[%s186] sm:$0xff] %vm195, 0.0
          %197 = vst.msk [vmem:[%s190] sm:$0xff] %vm195, 0.0
        $region32: #{tpu_custom_call.1} parent=23 // pred_fallthru
          _
        %v198 = vld [vmem:[%s158] sm:$0xff]
        %v199 = vld [vmem:[%s158 + $0x8] sm:$0xff]
        %v200 = vld [vmem:[%s158 + $0x10] sm:$0xff]
        %v201 = vld [vmem:[%s158 + $0x18] sm:$0xff]
        %v202 = vld [vmem:[%s186] sm:$0xff]
        %v203 = vadd.f32 %v198, %v199
        %v204 = vadd.f32 %v203, %v200
        %v205 = vadd.f32 %v204, %v201
        %206 = vadd.xlane.f32.xlu0 %v205
        %v207 = vpop.xlane.xlu0 %206
        %v208 = vadd.f32 %v202, %v207
        %vm209 = vcmask 7168
        %210 = vst.msk [vmem:[%s186] sm:$0xff] %vm209, %v208
        %v211 = vld [vmem:[%s190] sm:$0xff]
        %v212 = vmul.f32 %v198, %v198
        %v213 = vmul.f32 %v199, %v199
        %v214 = vmul.f32 %v200, %v200
        %v215 = vmul.f32 %v201, %v201
        %v216 = vadd.f32 %v212, %v213
        %v217 = vadd.f32 %v216, %v214
        %v218 = vadd.f32 %v217, %v215
        %219 = vadd.xlane.f32.xlu0 %v218
        %v220 = vpop.xlane.xlu0 %219
        %v221 = vadd.f32 %v211, %v220
        %222 = vst.msk [vmem:[%s190] sm:$0xff] %vm209, %v221
        %p223 = scmp.lt.s32.totalorder %s21, 1
        %s224 = scalar_select %p223, %s21, 1
        %s225 = smul.addr %s224, 8
        %s226 = scalar_lea.vmem %s1, %s225
        %p227 = scmp.lt.s32.totalorder %s21, 1
        %s228 = scalar_select %p227, %s21, 1
        %s229 = smul.addr %s228, 8
        %s230 = scalar_lea.vmem %s2, %s229
        // Predicated region
        $region33: #{tpu_custom_call.1} parent=23 // pred_check
          %p231 = pneg %p75
        $region34: #{tpu_custom_call.1} parent=23 // pred_check_branch
          %233 = sbr.rel (%p231) target = $region36
        $region35: #{tpu_custom_call.1} parent=23 // pred_region
          _
        $region36: #{tpu_custom_call.1} parent=23 // pred_fallthru
          _
        // Predicated region
        $region37: #{tpu_custom_call.1} parent=23 // pred_check
          %p234 = pneg %p101
        $region38: #{tpu_custom_call.1} parent=23 // pred_check_branch
          %236 = sbr.rel (%p234) target = $region40
        $region39: #{tpu_custom_call.1} parent=23 // pred_region
          _
        $region40: #{tpu_custom_call.1} parent=23 // pred_fallthru
          _
      $region24: #{tpu_custom_call.1} parent=5 // pred_fallthru
        _
      %p237 = scmp.le.s32.totalorder 2, %s12
      // Predicated region
      $region41: #{tpu_custom_call.1} parent=5 // pred_check
        %p238 = pneg %p237
      $region42: #{tpu_custom_call.1} parent=5 // pred_check_branch
        %240 = sbr.rel (%p238) target = $region44
      $region43: #{tpu_custom_call.1} parent=5 // pred_region
        %s241 = ssub.s32 %s12, 2
        // Predicated region
        $region45: #{tpu_custom_call.1} parent=43 // pred_check
          %p242 = pneg %p81
        $region46: #{tpu_custom_call.1} parent=43 // pred_check_branch
          %244 = sbr.rel (%p242) target = $region48
        $region47: #{tpu_custom_call.1} parent=43 // pred_region
          %p245 = scmp.lt.s32.totalorder %s23, 1
          %s246 = scalar_select %p245, %s23, 1
          %s247 = smul.addr %s246, 8
          %s248 = scalar_lea.vmem %s1, %s247
        $region48: #{tpu_custom_call.1} parent=43 // pred_fallthru
          _
        // Predicated region
        $region49: #{tpu_custom_call.1} parent=43 // pred_check
          %p249 = pneg %p107
        $region50: #{tpu_custom_call.1} parent=43 // pred_check_branch
          %251 = sbr.rel (%p249) target = $region52
        $region51: #{tpu_custom_call.1} parent=43 // pred_region
          %p252 = scmp.lt.s32.totalorder %s23, 1
          %s253 = scalar_select %p252, %s23, 1
          %s254 = smul.addr %s253, 8
          %s255 = scalar_lea.vmem %s2, %s254
        $region52: #{tpu_custom_call.1} parent=43 // pred_fallthru
          _
      $region44: #{tpu_custom_call.1} parent=5 // pred_fallthru
        _
    $region6: #{tpu_custom_call.1} parent=1 // loop_footer
      %s16 = sadd.s32 1, %s12
    $region7: #{tpu_custom_call.1} parent=1 // loop_footer_branch
      %11 = sbr.rel target = $region3
    $region8: #{tpu_custom_call.1} parent=1 // loop_exit
      _
    %256 = vsyncpa [#allocation3], 1
    %s257 = scalar_lea.sflag [#allocation3], 1
    %258 = vsyncpa %s257, 1

</llo_original>
